<compile_context>
chip_gen: v6e
topology: v6e:2x2x1
jax: 0.10.0
libtpu: 0.0.40
codegen_flags: <defaults>
</compile_context>

<pallas_src>
import functools

import jax
import jax.numpy as jnp
from jax.experimental import pallas as pl
from jax.experimental.pallas import tpu as pltpu

NEG_SLOPE = 0.01  # torch nn.LeakyReLU default negative_slope


def _leaky_relu(v):
    return jnp.where(v >= 0, v, NEG_SLOPE * v)


def _round_up(n, m):
    return ((n + m - 1) // m) * m


def cluster_kernel(x_ref, w1s_ref, b1s_ref, w2_ref, b2_ref, o_ref, *, hp):
    # x tile: [TM, DP] bf16 (already cast in the wrapper; no in-kernel cast).
    x = x_ref[...]

    # Fused first-layer + shortcut matmul: x @ [W1 | Ws]  (bf16 in, f32 accumulate)
    y = jnp.dot(x, w1s_ref[...], preferred_element_type=jnp.float32)
    y = y + b1s_ref[...]                      # fused bias [1, HP+CP], f32
    h = _leaky_relu(y[:, :hp])                # block branch, [TM, HP]
    s = y[:, hp:]                             # shortcut branch, [TM, CP]

    # Second layer of the block
    h2 = jnp.dot(h.astype(jnp.bfloat16), w2_ref[...],
                 preferred_element_type=jnp.float32)
    h2 = _leaky_relu(h2 + b2_ref[...])

    o_ref[...] = (h2 + s).astype(o_ref.dtype)


def prepare_params(params):
    """One-time weight prep: pad feature dims to lane-dense (x128) shapes,
    cast weights to bf16, and fuse the shortcut into the first matmul
    ([W1 | Ws], [b1 | bs]).  Done once at init so the per-call forward emits
    no pad/cast/concat HLOs over the weights."""
    w1, b1 = params["w1"], params["b1"]   # [D, H], [1, H]
    w2, b2 = params["w2"], params["b2"]   # [H, C], [1, C]
    ws, bs = params["ws"], params["bs"]   # [D, C], [1, C]
    D, H = w1.shape
    C = w2.shape[1]

    # TODO(synk): on v6e/v7x pad to multiples of 256 (256x256 MXU) when real
    # dims warrant it; 128 keeps v5e fully fed and is correct everywhere.
    DP = _round_up(D, 128)
    HP = _round_up(H, 128)
    CP = _round_up(C, 128)

    # Zero padding is safe: LeakyReLU(0)=0, padded H columns hit zero rows of
    # W2, padded C columns are sliced off at the end.
    w1p = jnp.zeros((DP, HP), jnp.bfloat16).at[:D, :H].set(w1.astype(jnp.bfloat16))
    wsp = jnp.zeros((DP, CP), jnp.bfloat16).at[:D, :C].set(ws.astype(jnp.bfloat16))
    w2p = jnp.zeros((HP, CP), jnp.bfloat16).at[:H, :C].set(w2.astype(jnp.bfloat16))
    b1p = jnp.zeros((1, HP), jnp.float32).at[:, :H].set(b1)
    bsp = jnp.zeros((1, CP), jnp.float32).at[:, :C].set(bs)
    b2p = jnp.zeros((1, CP), jnp.float32).at[:, :C].set(b2)

    return {
        "w1s": jnp.concatenate([w1p, wsp], axis=1),   # [DP, HP+CP] bf16
        "b1s": jnp.concatenate([b1p, bsp], axis=1),   # [1,  HP+CP] f32
        "w2": w2p,                                    # [HP, CP]    bf16
        "b2": b2p,                                    # [1,  CP]    f32
        "dims": (D, H, C, DP, HP, CP),
    }


def cluster_forward(x, prepared, *, tile_rows=256):
    """x: [B, D] f32.  prepared: output of prepare_params().

    tile_rows: batch tile. 256 is a safe default; prefer 512 on v6e (128 MiB
    VMEM) and 128-256 on v7x (64 MiB per TensorCore)."""
    B, D = x.shape
    D_, H, C, DP, HP, CP = prepared["dims"]
    assert D == D_, "input feature dim mismatch with prepared params"

    # Batch tile: >=8 sublanes. Choosing TM from B keeps batch padding small;
    # the while-loop keeps the grid at >=2 steps when possible so both v7x
    # TensorCores get work (no-op on v5e/v6e, and for tiny B we stop at 8).
    TM = min(tile_rows, _round_up(B, 8))
    while TM >= 16 and _round_up(B, TM) // TM < 2:
        TM = _round_up(TM // 2, 8)
    BP = _round_up(B, TM)

    # Single pad+cast pass over x: bf16 halves x's HBM read and VMEM buffers,
    # and the MXU consumes bf16 anyway.
    # TODO(synk): drop the batch padding (grid=pl.cdiv(B, TM)) once ragged
    # last-block semantics are verified; garbage rows only reach discarded
    # output rows.
    xp = jnp.zeros((BP, DP), jnp.bfloat16).at[:B, :D].set(x.astype(jnp.bfloat16))

    # Explicit scoped-VMEM budget: defaults (16 MiB v5e / 32 MiB v6e,v7x) are
    # far below what resident weights need at realistic sizes.  Cap at 56 MiB
    # so a single v7x TensorCore (64 MiB) still fits.
    est_vmem = (
        2 * TM * DP * 2            # x stream, bf16, double-buffered
        + 2 * TM * CP * 4          # output stream, f32, double-buffered
        + DP * (HP + CP) * 2       # resident fused W1|Ws, bf16, single-buffered
        + (HP + CP) * 4            # resident fused b1|bs, f32
        + HP * CP * 2 + CP * 4     # resident W2, b2
        + 2 * TM * (HP + CP) * 4   # f32 y/h/h2 intermediates + compiler scratch
    )
    vmem_limit = int(min(max(2 * est_vmem, 8 << 20), 56 << 20))
    # TODO(synk): when resident weights ((DP*(HP+CP)+HP*CP)*2B) approach
    # ~40 MiB (earlier on v7x), add a DP-reduction grid axis (last,
    # "arbitrary") with an f32 accumulator scratch instead of keeping all
    # weights resident.

    grid = (BP // TM,)
    out = pl.pallas_call(
        functools.partial(cluster_kernel, hp=HP),
        out_shape=jax.ShapeDtypeStruct((BP, CP), x.dtype),
        grid=grid,
        in_specs=[
            # x: streamed over batch (default double-buffering; bump to
            # pl.Buffered(3) if profiling shows exposed DMA on this stream).
            pl.BlockSpec((TM, DP), lambda i: (i, 0)),
            # Resident operands: constant index_map -> single-buffer to halve
            # their VMEM footprint.
            pl.BlockSpec((DP, HP + CP), lambda i: (0, 0),
                         pipeline_mode=pl.Buffered(1)),
            pl.BlockSpec((1, HP + CP), lambda i: (0, 0),
                         pipeline_mode=pl.Buffered(1)),
            pl.BlockSpec((HP, CP), lambda i: (0, 0),
                         pipeline_mode=pl.Buffered(1)),
            pl.BlockSpec((1, CP), lambda i: (0, 0),
                         pipeline_mode=pl.Buffered(1)),
        ],
        out_specs=pl.BlockSpec((TM, CP), lambda i: (i, 0)),
        compiler_params=pltpu.CompilerParams(
            dimension_semantics=("parallel",),
            vmem_limit_bytes=vmem_limit),
    )(xp, prepared["w1s"], prepared["b1s"], prepared["w2"], prepared["b2"])

    return out[:B, :C]


def init_params(key, input_dim, cluster_dim):
    """Deterministic init mimicking nn.Linear defaults (uniform +-1/sqrt(fan_in)),
    weights stored pre-transposed as [in, out]."""
    hidden = input_dim // 2
    ks = jax.random.split(key, 6)

    def lin(kw, kb, fan_in, fan_out):
        bound = 1.0 / jnp.sqrt(fan_in)
        w = jax.random.uniform(kw, (fan_in, fan_out), jnp.float32, -bound, bound)
        b = jax.random.uniform(kb, (1, fan_out), jnp.float32, -bound, bound)
        return w, b

    w1, b1 = lin(ks[0], ks[1], input_dim, hidden)
    w2, b2 = lin(ks[2], ks[3], hidden, cluster_dim)
    ws, bs = lin(ks[4], ks[5], input_dim, cluster_dim)
    return {"w1": w1, "b1": b1, "w2": w2, "b2": b2, "ws": ws, "bs": bs}


def cluster_reference(x, p):
    h = _leaky_relu(x @ p["w1"] + p["b1"])
    h = _leaky_relu(h @ p["w2"] + p["b2"])
    return h + (x @ p["ws"] + p["bs"])


if __name__ == "__main__":
    key = jax.random.PRNGKey(0)
    k_x, k_p = jax.random.split(key)

    batch, input_dim, cluster_dim = 8, 32, 16
    x = jax.random.normal(k_x, (batch, input_dim), jnp.float32)
    params = init_params(k_p, input_dim, cluster_dim)
    prepared = prepare_params(params)   # one-time weight prep (pad/cast/fuse)

    out = cluster_forward(x, prepared)
    out = jax.block_until_ready(out)

    ref = cluster_reference(x, params)
    assert out.shape == (batch, cluster_dim)
    # bf16 matmul operands with f32 accumulation -> relaxed tolerance vs f32 ref.
    assert jnp.allclose(out, ref, atol=2e-2, rtol=2e-2), "mismatch vs reference"

    print("KERNEL_OK")
</pallas_src>

<mosaic_0001>
module attributes {stable_mosaic.version = 11 : i64} {
  func.func @cluster_kernel(%arg0: i32, %arg1: memref<8x128xbf16, #tpu.memory_space<vmem>>, %arg2: memref<128x256xbf16, #tpu.memory_space<vmem>>, %arg3: memref<1x256xf32, #tpu.memory_space<vmem>>, %arg4: memref<128x128xbf16, #tpu.memory_space<vmem>>, %arg5: memref<1x128xf32, #tpu.memory_space<vmem>>, %arg6: memref<8x128xf32, #tpu.memory_space<vmem>>) attributes {dimension_semantics = [#tpu.dimension_semantics<parallel>], iteration_bounds = array<i64: 1>, scalar_prefetch = 0 : i64, scratch_operands = 0 : i64, tpu.core_type = #tpu.core_type<tc>, window_params = [{transform_indices = @transform_0, window_bounds = array<i64: 8, 128>}, {pipeline_mode = #tpu.pipeline_mode<synchronous>, transform_indices = @transform_1, window_bounds = array<i64: 128, 256>}, {pipeline_mode = #tpu.pipeline_mode<synchronous>, transform_indices = @transform_2, window_bounds = array<i64: 1, 256>}, {pipeline_mode = #tpu.pipeline_mode<synchronous>, transform_indices = @transform_3, window_bounds = array<i64: 128, 128>}, {pipeline_mode = #tpu.pipeline_mode<synchronous>, transform_indices = @transform_4, window_bounds = array<i64: 1, 128>}, {transform_indices = @transform_5, window_bounds = array<i64: 8, 128>}]} {
    %c0 = arith.constant 0 : index
    %c0_0 = arith.constant 0 : index
    %0 = vector.load %arg1[%c0, %c0_0] : memref<8x128xbf16, #tpu.memory_space<vmem>>, vector<8x128xbf16>
    %c0_1 = arith.constant 0 : index
    %c0_2 = arith.constant 0 : index
    %1 = vector.load %arg2[%c0_1, %c0_2] : memref<128x256xbf16, #tpu.memory_space<vmem>>, vector<128x256xbf16>
    %cst = arith.constant dense<0.000000e+00> : vector<8x256xf32>
    %2 = tpu.matmul %0, %1, %cst {dimension_numbers = #tpu.dot_dimension_numbers<[1], [0], [0], [1], [0, 0, 1, 1], [], []>} : vector<8x128xbf16>, vector<128x256xbf16>, vector<8x256xf32> -> vector<8x256xf32>
    %c0_3 = arith.constant 0 : index
    %c0_4 = arith.constant 0 : index
    %3 = vector.load %arg3[%c0_3, %c0_4] : memref<1x256xf32, #tpu.memory_space<vmem>>, vector<1x256xf32>
    %4 = vector.broadcast %3 : vector<1x256xf32> to vector<8x256xf32>
    %5 = arith.addf %2, %4 : vector<8x256xf32>
    %6 = vector.extract_strided_slice %5 {offsets = [0, 0], sizes = [8, 128], strides = [1, 1]} : vector<8x256xf32> to vector<8x128xf32>
    %cst_5 = arith.constant 0.000000e+00 : f32
    %7 = vector.broadcast %cst_5 : f32 to vector<8x128xf32>
    %8 = arith.cmpf oge, %6, %7 : vector<8x128xf32>
    %cst_6 = arith.constant 0.00999999977 : f32
    %9 = vector.broadcast %cst_6 : f32 to vector<8x128xf32>
    %10 = arith.mulf %9, %6 : vector<8x128xf32>
    %11 = arith.select %8, %6, %10 : vector<8x128xi1>, vector<8x128xf32>
    %12 = vector.extract_strided_slice %5 {offsets = [0, 128], sizes = [8, 128], strides = [1, 1]} : vector<8x256xf32> to vector<8x128xf32>
    %13 = arith.truncf %11 : vector<8x128xf32> to vector<8x128xbf16>
    %c0_7 = arith.constant 0 : index
    %c0_8 = arith.constant 0 : index
    %14 = vector.load %arg4[%c0_7, %c0_8] : memref<128x128xbf16, #tpu.memory_space<vmem>>, vector<128x128xbf16>
    %cst_9 = arith.constant dense<0.000000e+00> : vector<8x128xf32>
    %15 = tpu.matmul %13, %14, %cst_9 {dimension_numbers = #tpu.dot_dimension_numbers<[1], [0], [0], [1], [0, 0, 1, 1], [], []>} : vector<8x128xbf16>, vector<128x128xbf16>, vector<8x128xf32> -> vector<8x128xf32>
    %c0_10 = arith.constant 0 : index
    %c0_11 = arith.constant 0 : index
    %16 = vector.load %arg5[%c0_10, %c0_11] : memref<1x128xf32, #tpu.memory_space<vmem>>, vector<1x128xf32>
    %17 = vector.broadcast %16 : vector<1x128xf32> to vector<8x128xf32>
    %18 = arith.addf %15, %17 : vector<8x128xf32>
    %cst_12 = arith.constant 0.000000e+00 : f32
    %19 = vector.broadcast %cst_12 : f32 to vector<8x128xf32>
    %20 = arith.cmpf oge, %18, %19 : vector<8x128xf32>
    %cst_13 = arith.constant 0.00999999977 : f32
    %21 = vector.broadcast %cst_13 : f32 to vector<8x128xf32>
    %22 = arith.mulf %21, %18 : vector<8x128xf32>
    %23 = arith.select %20, %18, %22 : vector<8x128xi1>, vector<8x128xf32>
    %24 = arith.addf %23, %12 : vector<8x128xf32>
    %c0_14 = arith.constant 0 : index
    %c0_15 = arith.constant 0 : index
    %25 = vector.load %arg6[%c0_14, %c0_15] : memref<8x128xf32, #tpu.memory_space<vmem>>, vector<8x128xf32>
    tpu.vector_store %arg6[%c0_14, %c0_15], %24 {strides = array<i32>} : memref<8x128xf32, #tpu.memory_space<vmem>>, vector<8x128xf32>,
    return
  }
  func.func @transform_0(%arg0: i32) -> (i32, i32) {
    %c0_i32 = arith.constant 0 : i32
    %c0_i32_0 = arith.constant 0 : i32
    return %arg0, %c0_i32 : i32, i32
  }
  func.func @transform_1(%arg0: i32) -> (i32, i32) {
    %c0_i32 = arith.constant 0 : i32
    %c0_i32_0 = arith.constant 0 : i32
    %c0_i32_1 = arith.constant 0 : i32
    return %c0_i32, %c0_i32_0 : i32, i32
  }
  func.func @transform_2(%arg0: i32) -> (i32, i32) {
    %c0_i32 = arith.constant 0 : i32
    %c0_i32_0 = arith.constant 0 : i32
    %c0_i32_1 = arith.constant 0 : i32
    return %c0_i32, %c0_i32_0 : i32, i32
  }
  func.func @transform_3(%arg0: i32) -> (i32, i32) {
    %c0_i32 = arith.constant 0 : i32
    %c0_i32_0 = arith.constant 0 : i32
    %c0_i32_1 = arith.constant 0 : i32
    return %c0_i32, %c0_i32_0 : i32, i32
  }
  func.func @transform_4(%arg0: i32) -> (i32, i32) {
    %c0_i32 = arith.constant 0 : i32
    %c0_i32_0 = arith.constant 0 : i32
    %c0_i32_1 = arith.constant 0 : i32
    return %c0_i32, %c0_i32_0 : i32, i32
  }
  func.func @transform_5(%arg0: i32) -> (i32, i32) {
    %c0_i32 = arith.constant 0 : i32
    %c0_i32_0 = arith.constant 0 : i32
    return %arg0, %c0_i32 : i32, i32
  }
}

</mosaic_0001>

<llo_original>
// kernel: tpu_custom_call.1
$region0: #{tpu_custom_call.1}
  #allocation0 [shape = 'u32[]', space=smem, size = 0x4, offset = 0x4, fixed_abs, tag = 'smem constant byte address 0x4 - core index']
  #allocation1 [shape = 'u32[144,128]{1,0:T(1,128)}', space=vmem, size = 0x12000, scoped, tag = 'internal scratch']
  %s0 = inlined_call_operand.hbm [shape: bf16[8,128], index: 0, kind: input, shape index: {}]
  %s1 = inlined_call_operand.hbm [shape: bf16[128,256], index: 1, kind: input, shape index: {}]
  %s2 = inlined_call_operand.vmem [shape: f32[1,256], index: 2, kind: input, shape index: {}]
  %s3 = inlined_call_operand.hbm [shape: bf16[128,128], index: 3, kind: input, shape index: {}]
  %s4 = inlined_call_operand.vmem [shape: f32[1,128], index: 4, kind: input, shape index: {}]
  %s5 = inlined_call_operand.hbm [shape: f32[8,128], index: 5, kind: output, shape index: {}]
  %s6 = sld [smem:[#allocation0]]
  $region42: #{tpu_custom_call.1} parent=0
    _
  %s8 = ssub.s32 1, %s6
  %s9 = scalar_select 0, %s8, %s6
  $region1: #{tpu_custom_call.1} parent=0
    #allocation2 [shape = 'u8[2048]{0}', space=vmem, size = 0x800, scoped, tag = 'input window, operand 0, single buffered']
    #allocation3 [shape = 's32[1]{0}', space=sflag, size = 0x4, scoped, tag = 'scoped memory for tpu_custom_call.1']
    #allocation4 [shape = 's32[1]{0}', space=sflag, size = 0x4, scoped, tag = 'scoped memory for tpu_custom_call.1']
    #allocation5 [shape = 'u8[65536]{0}', space=vmem, size = 0x10000, scoped, tag = 'input window, operand 1, single buffered']
    #allocation6 [shape = 's32[1]{0}', space=sflag, size = 0x4, scoped, tag = 'scoped memory for tpu_custom_call.1']
    #allocation7 [shape = 'u8[32768]{0}', space=vmem, size = 0x8000, scoped, tag = 'input window, operand 3, single buffered']
    #allocation8 [shape = 'u8[4096]{0}', space=vmem, size = 0x1000, scoped, tag = 'output window, operand 0, single buffered']
    %10 = vsyncpa [#allocation3], 0
    %11 = vsyncpa [#allocation6], 0
    %12 = vsyncpa [#allocation4], 0
    // Predicated region
    $region2: #{tpu_custom_call.1} parent=1 // pred_check
      _
    $region3: #{tpu_custom_call.1} parent=1 // pred_check_branch
      %14 = sbr.rel (0) target = $region5
    $region4: #{tpu_custom_call.1} parent=1 // pred_region
      %s16 = ssub.s32 64, 64
      %17 = vsyncadd [#allocation3], %s16
      %s19 = sshll.u32 [#allocation2], 4
      %s20 = int_to_ptr.vmem [resolvable:$true] %s19
      %22 = dma.hbm_to_vmem [thread:$0]  %s0, 64, %s20, [#allocation3]
    $region5: #{tpu_custom_call.1} parent=1 // pred_fallthru
      _
    // Predicated region
    $region6: #{tpu_custom_call.1} parent=1 // pred_check
      _
    $region7: #{tpu_custom_call.1} parent=1 // pred_check_branch
      %24 = sbr.rel (0) target = $region9
    $region8: #{tpu_custom_call.1} parent=1 // pred_region
      %s26 = ssub.s32 2048, 2048
      %27 = vsyncadd [#allocation6], %s26
      %s28 = sshll.u32 [#allocation5], 4
      %s29 = int_to_ptr.vmem [resolvable:$true] %s28
      %34 = dma.hbm_to_vmem [thread:$0]  %s1, 2048, %s29, [#allocation6], 128, 128, 8
    $region9: #{tpu_custom_call.1} parent=1 // pred_fallthru
      _
    // Predicated region
    $region10: #{tpu_custom_call.1} parent=1 // pred_check
      _
    $region11: #{tpu_custom_call.1} parent=1 // pred_check_branch
      %36 = sbr.rel (0) target = $region13
    $region12: #{tpu_custom_call.1} parent=1 // pred_region
      _
    $region13: #{tpu_custom_call.1} parent=1 // pred_fallthru
      _
    // Predicated region
    $region14: #{tpu_custom_call.1} parent=1 // pred_check
      _
    $region15: #{tpu_custom_call.1} parent=1 // pred_check_branch
      %38 = sbr.rel (0) target = $region17
    $region16: #{tpu_custom_call.1} parent=1 // pred_region
      %s40 = ssub.s32 1024, 1024
      %41 = vsyncadd [#allocation6], %s40
      %s42 = sshll.u32 [#allocation7], 4
      %s43 = int_to_ptr.vmem [resolvable:$true] %s42
      %48 = dma.hbm_to_vmem [thread:$0]  %s3, 1024, %s43, [#allocation6], 64, 64, 4
    $region17: #{tpu_custom_call.1} parent=1 // pred_fallthru
      _
    // Predicated region
    $region18: #{tpu_custom_call.1} parent=1 // pred_check
      _
    $region19: #{tpu_custom_call.1} parent=1 // pred_check_branch
      %50 = sbr.rel (0) target = $region21
    $region20: #{tpu_custom_call.1} parent=1 // pred_region
      _
    $region21: #{tpu_custom_call.1} parent=1 // pred_fallthru
      _
    // Predicated region
    $region22: #{tpu_custom_call.1} parent=1 // pred_check
      _
    $region23: #{tpu_custom_call.1} parent=1 // pred_check_branch
      %52 = sbr.rel (0) target = $region25
    $region24: #{tpu_custom_call.1} parent=1 // pred_region
      %53 = dma.done [#allocation3], 64
    $region25: #{tpu_custom_call.1} parent=1 // pred_fallthru
      _
    // Predicated region
    $region26: #{tpu_custom_call.1} parent=1 // pred_check
      _
    $region27: #{tpu_custom_call.1} parent=1 // pred_check_branch
      %55 = sbr.rel (0) target = $region29
    $region28: #{tpu_custom_call.1} parent=1 // pred_region
      %56 = dma.done [#allocation6], 2048
    $region29: #{tpu_custom_call.1} parent=1 // pred_fallthru
      _
    // Predicated region
    $region30: #{tpu_custom_call.1} parent=1 // pred_check
      _
    $region31: #{tpu_custom_call.1} parent=1 // pred_check_branch
      %58 = sbr.rel (0) target = $region33
    $region32: #{tpu_custom_call.1} parent=1 // pred_region
      %59 = dma.done [#allocation6], 1024
    $region33: #{tpu_custom_call.1} parent=1 // pred_fallthru
      _
    %v61 = vld [vmem:[#allocation2] sm:$0xf]
    %v62 = vld [vmem:[#allocation5] sm:$0xff]
    %v63 = vld [vmem:[#allocation5 + $0x8] sm:$0xff]
    %v64 = vld [vmem:[#allocation5 + $0x10] sm:$0xff]
    %v65 = vld [vmem:[#allocation5 + $0x18] sm:$0xff]
    %v66 = vld [vmem:[#allocation5 + $0x20] sm:$0xff]
    %v67 = vld [vmem:[#allocation5 + $0x28] sm:$0xff]
    %v68 = vld [vmem:[#allocation5 + $0x30] sm:$0xff]
    %v69 = vld [vmem:[#allocation5 + $0x38] sm:$0xff]
    %v70 = vld [vmem:[#allocation5 + $0x40] sm:$0xff]
    %v71 = vld [vmem:[#allocation5 + $0x48] sm:$0xff]
    %v72 = vld [vmem:[#allocation5 + $0x50] sm:$0xff]
    %v73 = vld [vmem:[#allocation5 + $0x58] sm:$0xff]
    %v74 = vld [vmem:[#allocation5 + $0x60] sm:$0xff]
    %v75 = vld [vmem:[#allocation5 + $0x68] sm:$0xff]
    %v76 = vld [vmem:[#allocation5 + $0x70] sm:$0xff]
    %v77 = vld [vmem:[#allocation5 + $0x78] sm:$0xff]
    %v78 = vld [vmem:[%s2] sm:$0x3]
    %v80 = vlaneseq
    %v81 = vshrl.u32 %v80, 7
    %v82 = vsub.s32 0, %v81
    %v83 = vrot.slane %v78, %v82
    %v84 = vlaneseq
    %v85 = vshrl.u32 %v84, 7
    %v86 = vsub.s32 1, %v85
    %v87 = vrot.slane %v78, %v86
    %v106 = vunpack.c.l.b16 %v62
    %v107 = vunpack.c.h.b16 %v62
    %v108 = vunpack.c.l.b16 %v63
    %v109 = vunpack.c.h.b16 %v63
    %v110 = vunpack.c.l.b16 %v64
    %v111 = vunpack.c.h.b16 %v64
    %v112 = vunpack.c.l.b16 %v65
    %v113 = vunpack.c.h.b16 %v65
    %v114 = vunpack.c.l.b16 %v66
    %v115 = vunpack.c.h.b16 %v66
    %v116 = vunpack.c.l.b16 %v67
    %v117 = vunpack.c.h.b16 %v67
    %v118 = vunpack.c.l.b16 %v68
    %v119 = vunpack.c.h.b16 %v68
    %v120 = vunpack.c.l.b16 %v69
    %v121 = vunpack.c.h.b16 %v69
    %v122 = vunpack.c.l.b16 %v70
    %v123 = vunpack.c.h.b16 %v70
    %v124 = vunpack.c.l.b16 %v71
    %v125 = vunpack.c.h.b16 %v71
    %v126 = vunpack.c.l.b16 %v72
    %v127 = vunpack.c.h.b16 %v72
    %v128 = vunpack.c.l.b16 %v73
    %v129 = vunpack.c.h.b16 %v73
    %v130 = vunpack.c.l.b16 %v74
    %v131 = vunpack.c.h.b16 %v74
    %v132 = vunpack.c.l.b16 %v75
    %v133 = vunpack.c.h.b16 %v75
    %v134 = vunpack.c.l.b16 %v76
    %v135 = vunpack.c.h.b16 %v76
    %v136 = vunpack.c.l.b16 %v77
    %v137 = vunpack.c.h.b16 %v77
    %v138 = vpack.c.b16 %v108, %v106
    %v139 = vpack.c.b16 %v109, %v107
    %v140 = vpack.c.b16 %v112, %v110
    %v141 = vpack.c.b16 %v113, %v111
    %v142 = vpack.c.b16 %v116, %v114
    %v143 = vpack.c.b16 %v117, %v115
    %v144 = vpack.c.b16 %v120, %v118
    %v145 = vpack.c.b16 %v121, %v119
    %v146 = vpack.c.b16 %v124, %v122
    %v147 = vpack.c.b16 %v125, %v123
    %v148 = vpack.c.b16 %v128, %v126
    %v149 = vpack.c.b16 %v129, %v127
    %v150 = vpack.c.b16 %v132, %v130
    %v151 = vpack.c.b16 %v133, %v131
    %v152 = vpack.c.b16 %v136, %v134
    %v153 = vpack.c.b16 %v137, %v135
    %170 = vmatprep.subr.bf16.mxu0 %v153
    %171 = vmatpush1.bf16.msra.mxu0 %v152
    %172 = vmatprep.subr.bf16.mxu0 %v151
    %173 = vmatpush1.bf16.msra.mxu0 %v150
    %174 = vmatprep.subr.bf16.mxu0 %v149
    %175 = vmatpush1.bf16.msra.mxu0 %v148
    %176 = vmatprep.subr.bf16.mxu0 %v147
    %177 = vmatpush1.bf16.msra.mxu0 %v146
    %178 = vmatprep.subr.bf16.mxu0 %v145
    %179 = vmatpush1.bf16.msra.mxu0 %v144
    %180 = vmatprep.subr.bf16.mxu0 %v143
    %181 = vmatpush1.bf16.msra.mxu0 %v142
    %182 = vmatprep.subr.bf16.mxu0 %v141
    %183 = vmatpush1.bf16.msra.mxu0 %v140
    %184 = vmatprep.subr.bf16.mxu0 %v139
    %185 = vmatpush1.bf16.msra.mxu0 %v138
    %186 = vmatprep.subr.bf16.mxu0 0
    %187 = vmatpush2.bf16.msra.mxu0 0
    %188 = vmatprep.subr.bf16.mxu0 0
    %189 = vmatpush2.bf16.msra.mxu0 0
    %190 = vmatprep.subr.bf16.mxu0 0
    %191 = vmatpush2.bf16.msra.mxu0 0
    %192 = vmatprep.subr.bf16.mxu0 0
    %193 = vmatpush2.bf16.msra.mxu0 0
    %194 = vmatprep.subr.bf16.mxu0 0
    %195 = vmatpush2.bf16.msra.mxu0 0
    %196 = vmatprep.subr.bf16.mxu0 0
    %197 = vmatpush2.bf16.msra.mxu0 0
    %198 = vmatprep.subr.bf16.mxu0 0
    %199 = vmatpush2.bf16.msra.mxu0 0
    %200 = vmatprep.subr.bf16.mxu0 0
    %201 = vmatpush2.bf16.msra.mxu0 0
    %202 = vmatprep.mubr.bf16.mxu0 0
    %203 = vmatmul.mubr.bf16.gmra.mxu0 %v61
    %v204 = vpop.f32.mrf.mxu0
    %v205 = vadd.f32 %v83, %v204
    %v206 = vpop.f32.mrf.mxu0
    %v207 = vadd.f32 %v87, %v206
    %v208 = vpop.f32.mrf.mxu0
    %v209 = vpop.f32.mrf.mxu0
    %210 = vdwg.mxu0
    %vm211 = vcmp.ge.f32.partialorder %v205, 0.0
    %v212 = vmul.f32 %v205, 0.01
    %v213 = vsel %vm211, %v205, %v212
    %v214 = vpack.c.bf16 %v213, %v213
    %v215 = vld [vmem:[#allocation7] sm:$0xf]
    %v216 = vld [vmem:[#allocation7 + $0x4] sm:$0xf]
    %v217 = vld [vmem:[#allocation7 + $0x8] sm:$0xf]
    %v218 = vld [vmem:[#allocation7 + $0xc] sm:$0xf]
    %v219 = vld [vmem:[#allocation7 + $0x10] sm:$0xf]
    %v220 = vld [vmem:[#allocation7 + $0x14] sm:$0xf]
    %v221 = vld [vmem:[#allocation7 + $0x18] sm:$0xf]
    %v222 = vld [vmem:[#allocation7 + $0x1c] sm:$0xf]
    %v223 = vld [vmem:[#allocation7 + $0x20] sm:$0xf]
    %v224 = vld [vmem:[#allocation7 + $0x24] sm:$0xf]
    %v225 = vld [vmem:[#allocation7 + $0x28] sm:$0xf]
    %v226 = vld [vmem:[#allocation7 + $0x2c] sm:$0xf]
    %v227 = vld [vmem:[#allocation7 + $0x30] sm:$0xf]
    %v228 = vld [vmem:[#allocation7 + $0x34] sm:$0xf]
    %v229 = vld [vmem:[#allocation7 + $0x38] sm:$0xf]
    %v230 = vld [vmem:[#allocation7 + $0x3c] sm:$0xf]
    %v231 = vld [vmem:[%s4] sm:$0x1]
    %v233 = vlaneseq
    %v234 = vshrl.u32 %v233, 7
    %v235 = vsub.s32 0, %v234
    %v236 = vrot.slane %v231, %v235
    %v254 = vunpack.c.l.b16 %v215
    %v255 = vunpack.c.l.b16 %v216
    %v256 = vunpack.c.l.b16 %v217
    %v257 = vunpack.c.l.b16 %v218
    %v258 = vunpack.c.l.b16 %v219
    %v259 = vunpack.c.l.b16 %v220
    %v260 = vunpack.c.l.b16 %v221
    %v261 = vunpack.c.l.b16 %v222
    %v262 = vunpack.c.l.b16 %v223
    %v263 = vunpack.c.l.b16 %v224
    %v264 = vunpack.c.l.b16 %v225
    %v265 = vunpack.c.l.b16 %v226
    %v266 = vunpack.c.l.b16 %v227
    %v267 = vunpack.c.l.b16 %v228
    %v268 = vunpack.c.l.b16 %v229
    %v269 = vunpack.c.l.b16 %v230
    %v270 = vpack.c.b16 %v255, %v254
    %v271 = vpack.c.b16 %v257, %v256
    %v272 = vpack.c.b16 %v259, %v258
    %v273 = vpack.c.b16 %v261, %v260
    %v274 = vpack.c.b16 %v263, %v262
    %v275 = vpack.c.b16 %v265, %v264
    %v276 = vpack.c.b16 %v267, %v266
    %v277 = vpack.c.b16 %v269, %v268
    %286 = vmatprep.subr.bf16.mxu0 0
    %287 = vmatpush1.bf16.msra.mxu0 %v277
    %288 = vmatprep.subr.bf16.mxu0 0
    %289 = vmatpush1.bf16.msra.mxu0 %v276
    %290 = vmatprep.subr.bf16.mxu0 0
    %291 = vmatpush1.bf16.msra.mxu0 %v275
    %292 = vmatprep.subr.bf16.mxu0 0
    %293 = vmatpush1.bf16.msra.mxu0 %v274
    %294 = vmatprep.subr.bf16.mxu0 0
    %295 = vmatpush1.bf16.msra.mxu0 %v273
    %296 = vmatprep.subr.bf16.mxu0 0
    %297 = vmatpush1.bf16.msra.mxu0 %v272
    %298 = vmatprep.subr.bf16.mxu0 0
    %299 = vmatpush1.bf16.msra.mxu0 %v271
    %300 = vmatprep.subr.bf16.mxu0 0
    %301 = vmatpush1.bf16.msra.mxu0 %v270
    %302 = vmatprep.subr.bf16.mxu0 0
    %303 = vmatpush2.bf16.msra.mxu0 0
    %304 = vmatprep.subr.bf16.mxu0 0
    %305 = vmatpush2.bf16.msra.mxu0 0
    %306 = vmatprep.subr.bf16.mxu0 0
    %307 = vmatpush2.bf16.msra.mxu0 0
    %308 = vmatprep.subr.bf16.mxu0 0
    %309 = vmatpush2.bf16.msra.mxu0 0
    %310 = vmatprep.subr.bf16.mxu0 0
    %311 = vmatpush2.bf16.msra.mxu0 0
    %312 = vmatprep.subr.bf16.mxu0 0
    %313 = vmatpush2.bf16.msra.mxu0 0
    %314 = vmatprep.subr.bf16.mxu0 0
    %315 = vmatpush2.bf16.msra.mxu0 0
    %316 = vmatprep.subr.bf16.mxu0 0
    %317 = vmatpush2.bf16.msra.mxu0 0
    %318 = vmatprep.mubr.bf16.mxu0 0
    %319 = vmatmul.mubr.bf16.gmra.mxu0 %v214
    %v320 = vpop.f32.mrf.mxu0
    %v321 = vadd.f32 %v236, %v320
    %v322 = vpop.f32.mrf.mxu0
    %v323 = vpop.f32.mrf.mxu0
    %v324 = vpop.f32.mrf.mxu0
    %325 = vdwg.mxu0
    %vm326 = vcmp.ge.f32.partialorder %v321, 0.0
    %v327 = vmul.f32 %v321, 0.01
    %v328 = vsel %vm326, %v321, %v327
    %v329 = vadd.f32 %v328, %v207
    %330 = vst [vmem:[#allocation8] sm:$0xff] %v329
    // Predicated region
    $region34: #{tpu_custom_call.1} parent=1 // pred_check
      _
    $region35: #{tpu_custom_call.1} parent=1 // pred_check_branch
      %332 = sbr.rel (0) target = $region37
    $region36: #{tpu_custom_call.1} parent=1 // pred_region
      %s334 = ssub.s32 128, 128
      %335 = vsyncadd [#allocation4], %s334
      %s337 = sshll.u32 [#allocation8], 4
      %s338 = int_to_ptr.vmem [resolvable:$true] %s337
      %340 = dma.vmem_to_hbm [thread:$0]  %s338, 128, %s5, [#allocation4]
    $region37: #{tpu_custom_call.1} parent=1 // pred_fallthru
      _
    // Predicated region
    $region38: #{tpu_custom_call.1} parent=1 // pred_check
      _
    $region39: #{tpu_custom_call.1} parent=1 // pred_check_branch
      %342 = sbr.rel (0) target = $region41
    $region40: #{tpu_custom_call.1} parent=1 // pred_region
      %343 = dma.done [#allocation4], 128
    $region41: #{tpu_custom_call.1} parent=1 // pred_fallthru
      _
    %344 = vsyncpa [#allocation3], 1
    %345 = vsyncpa [#allocation6], 1
    %346 = vsyncpa [#allocation4], 1

</llo_original>
